<compile_context>
chip_gen: v7x
topology: tpu7x:2x2x1
jax: 0.10.0
libtpu: 0.0.40
codegen_flags: <defaults>
</compile_context>

<pallas_src>
import functools

import jax
import jax.numpy as jnp
from jax.experimental import pallas as pl
from jax.experimental.pallas import tpu as pltpu


def _attn_net_kernel(x_ref, w1_ref, b1_ref, w2_ref, b2_ref, out_ref, *, n_classes_is_one):
    # First layer: Linear(L, D) + Tanh. Matmul inputs may be bf16; accumulate in f32.
    a = jnp.tanh(
        jnp.dot(x_ref[...], w1_ref[...], preferred_element_type=jnp.float32)
        + b1_ref[...]
    )
    if n_classes_is_one:
        # Second layer is a (D -> 1) matvec: keep it off the MXU (would be 1/128..1/256
        # lane-utilized) and use the VPU multiply + XLU lane reduction instead.
        # w2_ref holds the weight as a (1, D) f32 row.
        A = jnp.sum(a * w2_ref[...], axis=-1, keepdims=True) + b2_ref[...]
    else:
        A = (
            jnp.dot(a, w2_ref[...], preferred_element_type=jnp.float32)
            + b2_ref[...]
        )
    out_ref[...] = A.astype(out_ref.dtype)


def _choose_tile_n(N, sublane):
    """Largest row tile (<=1024) dividing N, multiple of the sublane granularity,
    giving at least 2 grid steps (pipelining + megacore split). Falls back to N."""
    for cand in (1024, 512, 256, 128, 64, 32, 16, 8):
        if cand % sublane == 0 and cand < N and N % cand == 0:
            return cand
    return N


def attn_net_forward(x, params, *, tile_n=None, stream_dtype=jnp.bfloat16,
                     vmem_limit_bytes=32 * 1024 * 1024):
    """Attn_Net forward. Returns (A, x) like the PyTorch module.

    params = (w1, b1, w2, b2) with w1: (L, D), b1: (1, D), w2: (D, n_classes),
    b2: (1, n_classes) -- weights pre-transposed to (in_features, out_features).
    """
    w1, b1, w2, b2 = params
    N, L = x.shape
    D = w1.shape[1]
    n_classes = w2.shape[1]

    # Bandwidth: optionally stream x / W1 as bf16 (f32 MXU accumulation keeps accuracy).
    if stream_dtype is not None and x.dtype != stream_dtype:
        x_in = x.astype(stream_dtype)
        w1_in = w1.astype(stream_dtype)
    else:
        x_in, w1_in = x, w1
    sublane = 16 if jnp.dtype(x_in.dtype).itemsize == 2 else 8

    if tile_n is None:
        tile_n = _choose_tile_n(N, sublane)
    assert N % tile_n == 0, "N must be divisible by tile_n"
    assert tile_n == N or tile_n % sublane == 0, (
        "tile_n must be a multiple of 8 (f32) / 16 (bf16) unless it equals N"
    )
    grid = (N // tile_n,)

    # Biases and the (tiny) second-layer weight stay in f32.
    b1_in = b1.astype(jnp.float32)
    b2_in = b2.astype(jnp.float32)
    if n_classes == 1:
        w2_in = w2.reshape(1, D).astype(jnp.float32)           # row for the VPU matvec
        w2_spec = pl.BlockSpec((1, D), lambda i: (0, 0))
    else:
        w2_in = w2.astype(jnp.float32)
        w2_spec = pl.BlockSpec((D, n_classes), lambda i: (0, 0))

    kernel = functools.partial(_attn_net_kernel, n_classes_is_one=(n_classes == 1))

    A = pl.pallas_call(
        kernel,
        out_shape=jax.ShapeDtypeStruct((N, n_classes), x.dtype),
        grid_spec=pltpu.PrefetchScalarGridSpec(
            num_scalar_prefetch=0,
            grid=grid,
            in_specs=[
                pl.BlockSpec((tile_n, L), lambda i: (i, 0)),     # x tile (pipelined)
                pl.BlockSpec((L, D), lambda i: (0, 0)),          # W1 (resident)
                pl.BlockSpec((1, D), lambda i: (0, 0)),          # b1
                w2_spec,                                         # W2
                pl.BlockSpec((1, n_classes), lambda i: (0, 0)),  # b2
            ],
            out_specs=pl.BlockSpec((tile_n, n_classes), lambda i: (i, 0)),
        ),
        compiler_params=pltpu.CompilerParams(
            dimension_semantics=("parallel",),
            vmem_limit_bytes=vmem_limit_bytes,
        ),
    )(x_in, w1_in, b1_in, w2_in, b2_in)
    return A, x


def init_params(key, L, D, n_classes, dtype=jnp.float32):
    """Deterministic init mimicking nn.Linear's uniform(-1/sqrt(fan_in), 1/sqrt(fan_in))."""
    keys = jax.random.split(key, 4)

    def lin(kw, kb, fan_in, fan_out):
        bound = 1.0 / jnp.sqrt(jnp.asarray(fan_in, dtype))
        w = jax.random.uniform(kw, (fan_in, fan_out), dtype, -bound, bound)
        b = jax.random.uniform(kb, (1, fan_out), dtype, -bound, bound)
        return w, b

    w1, b1 = lin(keys[0], keys[1], L, D)
    w2, b2 = lin(keys[2], keys[3], D, n_classes)
    return w1, b1, w2, b2


if __name__ == "__main__":
    # Small demo shapes consistent with the module (real CLAM uses L=1024, D=256, N~1e3-1e4).
    N, L, D, n_classes = 256, 128, 64, 1

    key = jax.random.PRNGKey(0)
    k_x, k_p = jax.random.split(key)
    x = jax.random.normal(k_x, (N, L), dtype=jnp.float32)
    params = init_params(k_p, L, D, n_classes)

    # Default path: bf16-streamed inputs, tile_n=128 -> grid of 2 steps (pipelined).
    A, x_out = attn_net_forward(x, params)
    A = jax.block_until_ready(A)
    x_out = jax.block_until_ready(x_out)

    w1, b1, w2, b2 = params
    hp = jax.lax.Precision.HIGHEST
    A_ref = jnp.dot(jnp.tanh(jnp.dot(x, w1, precision=hp) + b1), w2, precision=hp) + b2
    assert A.shape == (N, n_classes)
    assert x_out.shape == (N, L)
    # bf16-streamed x/W1 with f32 accumulation: loosened tolerance.
    assert jnp.allclose(A, A_ref, atol=3e-2, rtol=3e-2)
    assert jnp.array_equal(x_out, x)

    # Also exercise the n_classes > 1 (MXU second-layer) path in pure f32.
    params3 = init_params(jax.random.PRNGKey(1), L, D, 3)
    A3, _ = attn_net_forward(x, params3, stream_dtype=None)
    A3 = jax.block_until_ready(A3)
    w1b, b1b, w2b, b2b = params3
    A3_ref = jnp.dot(jnp.tanh(jnp.dot(x, w1b, precision=hp) + b1b), w2b, precision=hp) + b2b
    assert A3.shape == (N, 3)
    assert jnp.allclose(A3, A3_ref, atol=1e-3, rtol=1e-3)

    print("KERNEL_OK")
</pallas_src>

<mosaic_0001>
module attributes {stable_mosaic.version = 11 : i64} {
  func.func @_attn_net_kernel(%arg0: i32, %arg1: memref<128x128xbf16, #tpu.memory_space<vmem>>, %arg2: memref<128x64xbf16, #tpu.memory_space<vmem>>, %arg3: memref<1x64xf32, #tpu.memory_space<vmem>>, %arg4: memref<1x64xf32, #tpu.memory_space<vmem>>, %arg5: memref<1x1xf32, #tpu.memory_space<vmem>>, %arg6: memref<128x1xf32, #tpu.memory_space<vmem>>) attributes {dimension_semantics = [#tpu.dimension_semantics<parallel>], iteration_bounds = array<i64: 2>, scalar_prefetch = 0 : i64, scratch_operands = 0 : i64, tpu.core_type = #tpu.core_type<tc>, window_params = [{transform_indices = @transform_0, window_bounds = array<i64: 128, 128>}, {pipeline_mode = #tpu.pipeline_mode<synchronous>, transform_indices = @transform_1, window_bounds = array<i64: 128, 64>}, {pipeline_mode = #tpu.pipeline_mode<synchronous>, transform_indices = @transform_2, window_bounds = array<i64: 1, 64>}, {pipeline_mode = #tpu.pipeline_mode<synchronous>, transform_indices = @transform_3, window_bounds = array<i64: 1, 64>}, {pipeline_mode = #tpu.pipeline_mode<synchronous>, transform_indices = @transform_4, window_bounds = array<i64: 1, 1>}, {transform_indices = @transform_5, window_bounds = array<i64: 128, 1>}]} {
    %c0 = arith.constant 0 : index
    %c0_0 = arith.constant 0 : index
    %0 = vector.load %arg1[%c0, %c0_0] : memref<128x128xbf16, #tpu.memory_space<vmem>>, vector<128x128xbf16>
    %c0_1 = arith.constant 0 : index
    %c0_2 = arith.constant 0 : index
    %1 = vector.load %arg2[%c0_1, %c0_2] : memref<128x64xbf16, #tpu.memory_space<vmem>>, vector<128x64xbf16>
    %cst = arith.constant dense<0.000000e+00> : vector<128x64xf32>
    %2 = tpu.matmul %0, %1, %cst {dimension_numbers = #tpu.dot_dimension_numbers<[1], [0], [0], [1], [0, 0, 1, 1], [], []>} : vector<128x128xbf16>, vector<128x64xbf16>, vector<128x64xf32> -> vector<128x64xf32>
    %c0_3 = arith.constant 0 : index
    %c0_4 = arith.constant 0 : index
    %3 = vector.load %arg3[%c0_3, %c0_4] : memref<1x64xf32, #tpu.memory_space<vmem>>, vector<1x64xf32>
    %4 = vector.broadcast %3 : vector<1x64xf32> to vector<128x64xf32>
    %5 = arith.addf %2, %4 : vector<128x64xf32>
    %6 = math.tanh %5 : vector<128x64xf32>
    %c0_5 = arith.constant 0 : index
    %c0_6 = arith.constant 0 : index
    %7 = vector.load %arg4[%c0_5, %c0_6] : memref<1x64xf32, #tpu.memory_space<vmem>>, vector<1x64xf32>
    %8 = vector.broadcast %7 : vector<1x64xf32> to vector<128x64xf32>
    %9 = arith.mulf %6, %8 : vector<128x64xf32>
    %cst_7 = arith.constant dense<0.000000e+00> : vector<128xf32>
    %10 = vector.multi_reduction <add>, %9, %cst_7 [1] : vector<128x64xf32> to vector<128xf32>
    %11 = vector.shape_cast %10 : vector<128xf32> to vector<128x1xf32>
    %c0_8 = arith.constant 0 : index
    %c0_9 = arith.constant 0 : index
    %12 = vector.load %arg5[%c0_8, %c0_9] : memref<1x1xf32, #tpu.memory_space<vmem>>, vector<1x1xf32>
    %13 = vector.broadcast %12 : vector<1x1xf32> to vector<128x1xf32>
    %14 = arith.addf %11, %13 : vector<128x1xf32>
    %c0_10 = arith.constant 0 : index
    %c0_11 = arith.constant 0 : index
    %15 = vector.load %arg6[%c0_10, %c0_11] : memref<128x1xf32, #tpu.memory_space<vmem>>, vector<128x1xf32>
    tpu.vector_store %arg6[%c0_10, %c0_11], %14 {strides = array<i32>} : memref<128x1xf32, #tpu.memory_space<vmem>>, vector<128x1xf32>,
    return
  }
  func.func @transform_0(%arg0: i32) -> (i32, i32) {
    %c0_i32 = arith.constant 0 : i32
    %c0_i32_0 = arith.constant 0 : i32
    return %arg0, %c0_i32 : i32, i32
  }
  func.func @transform_1(%arg0: i32) -> (i32, i32) {
    %c0_i32 = arith.constant 0 : i32
    %c0_i32_0 = arith.constant 0 : i32
    %c0_i32_1 = arith.constant 0 : i32
    return %c0_i32, %c0_i32_0 : i32, i32
  }
  func.func @transform_2(%arg0: i32) -> (i32, i32) {
    %c0_i32 = arith.constant 0 : i32
    %c0_i32_0 = arith.constant 0 : i32
    %c0_i32_1 = arith.constant 0 : i32
    return %c0_i32, %c0_i32_0 : i32, i32
  }
  func.func @transform_3(%arg0: i32) -> (i32, i32) {
    %c0_i32 = arith.constant 0 : i32
    %c0_i32_0 = arith.constant 0 : i32
    %c0_i32_1 = arith.constant 0 : i32
    return %c0_i32, %c0_i32_0 : i32, i32
  }
  func.func @transform_4(%arg0: i32) -> (i32, i32) {
    %c0_i32 = arith.constant 0 : i32
    %c0_i32_0 = arith.constant 0 : i32
    %c0_i32_1 = arith.constant 0 : i32
    return %c0_i32, %c0_i32_0 : i32, i32
  }
  func.func @transform_5(%arg0: i32) -> (i32, i32) {
    %c0_i32 = arith.constant 0 : i32
    %c0_i32_0 = arith.constant 0 : i32
    return %arg0, %c0_i32 : i32, i32
  }
}

</mosaic_0001>

<llo_original>
// kernel: tpu_custom_call.1
$region0: #{tpu_custom_call.1}
  #allocation0 [shape = 'u32[]', space=smem, size = 0x4, offset = 0x4, fixed_abs, tag = 'smem constant byte address 0x4 - core index']
  #allocation1 [shape = 'u32[144,128]{1,0:T(1,128)}', space=vmem, size = 0x12000, scoped, tag = 'internal scratch']
  #allocation2 [shape = 'f32[1,1]{1,0:T(1,128)S(1)}', space=vmem, size = 0x200, scoped, tag = 'scoped memory for tpu_custom_call.1']
  %s0 = inlined_call_operand.hbm [shape: bf16[256,128], index: 0, kind: input, shape index: {}]
  %s1 = inlined_call_operand.vmem [shape: bf16[128,64], index: 1, kind: input, shape index: {}]
  %s2 = inlined_call_operand.vmem [shape: f32[1,64], index: 2, kind: input, shape index: {}]
  %s3 = inlined_call_operand.vmem [shape: f32[1,64], index: 3, kind: input, shape index: {}]
  %s4 = inlined_call_operand.<no memory space> [shape: f32[1,1], index: 4, kind: input, shape index: {}]
  %s5 = inlined_call_operand.vmem [shape: f32[256,1], index: 5, kind: output, shape index: {}]
  %s6 = sld [smem:[#allocation0]]
  $region57: #{tpu_custom_call.1} parent=0
    _
  %s8 = ssub.s32 1, %s6
  %s9 = scalar_select 0, %s8, %s6
  %v10 = vstv %s4
  %11 = vst [vmem:[#allocation2] sm:$0x1] %v10
  $region1: #{tpu_custom_call.1} parent=0
    #allocation3 [shape = 'u8[65536]{0}', space=vmem, size = 0x10000, scoped, tag = 'input window, operand 0']
    #allocation4 [shape = 's32[2]{0}', space=sflag, size = 0x8, scoped, tag = 'scoped memory for tpu_custom_call.1']
    %12 = vsyncpa [#allocation4], 0
    %s13 = scalar_lea.sflag [#allocation4], 1
    %14 = vsyncpa %s13, 0
    loop: start=0, step=1, limit=4
    $region2: #{tpu_custom_call.1} parent=1 // loop_pre_header
      _
    $region3: #{tpu_custom_call.1} parent=1 // loop_header
      %s16 = sphi 0, %s20
      %p17 = scmp.ge.s32.totalorder %s16, 4
      %s26 = sphi 0, %s28
      %s29 = sphi 0, %s26
      %s30 = sphi 0, %s29
      %s46 = sphi 0, %s30
      %s50 = sphi 0, %s50
      %s52 = sphi 0, %s50
      %s53 = sphi 0, %s52
      %s67 = sphi 0, %s53
      %s71 = sphi 0, %s71
      %s73 = sphi 0, %s71
      %s74 = sphi 0, %s73
      %s88 = sphi 0, %s74
      %s92 = sphi 0, %s92
      %s94 = sphi 0, %s92
      %s95 = sphi 0, %s94
      %s109 = sphi 0, %s95
      %s113 = sphi 0, %s113
      %s115 = sphi 0, %s113
      %s116 = sphi 0, %s115
      %s130 = sphi 0, %s116
      %s136 = sphi 0, %s138
      %s139 = sphi 0, %s136
      %s140 = sphi 0, %s139
      %s156 = sphi 0, %s140
    $region4: #{tpu_custom_call.1} parent=1 // loop_header_branch
      %19 = sbr.rel (%p17) target = $region8
    $region5: #{tpu_custom_call.1} parent=1 // loop_body
      %s21 = ssub.s32 %s16, 1
      %s22 = ssub.s32 %s16, 2
      %s23 = sadd.s32 %s16, 1
      %s24 = ssub.s32 %s16, %s23
      %p25 = scmp.eq.s32.totalorder %s24, 0
      %s27 = sadd.s32 %s26, 1
      %s28 = scalar_select %p25, %s26, %s27
      %p31 = pneg %p25
      %p32 = scmp.eq.s32.totalorder %s16, 1
      %p33 = por %p31, %p32
      %p34 = scmp.ne.s32.totalorder %s26, %s29
      %p35 = scmp.eq.s32.totalorder %s16, 0
      %p36 = por %p34, %p35
      %p37 = scmp.ne.s32.totalorder %s26, %s29
      %p38 = scmp.eq.s32.totalorder %s21, 1
      %p39 = por %p37, %p38
      %p40 = scmp.ne.s32.totalorder %s29, %s30
      %p41 = scmp.eq.s32.totalorder %s21, 0
      %p42 = por %p40, %p41
      %p43 = scmp.ne.s32.totalorder %s29, %s30
      %p44 = scmp.eq.s32.totalorder %s22, 1
      %p45 = por %p43, %p44
      %p47 = scmp.ne.s32.totalorder %s30, %s46
      %p48 = scmp.eq.s32.totalorder %s22, 0
      %p49 = por %p47, %p48
      %s51 = sadd.s32 %s50, 1
      %p54 = scmp.eq.s32.totalorder %s16, 1
      %p55 = scmp.ne.s32.totalorder %s50, %s52
      %p56 = scmp.eq.s32.totalorder %s16, 0
      %p57 = por %p55, %p56
      %p58 = scmp.ne.s32.totalorder %s50, %s52
      %p59 = scmp.eq.s32.totalorder %s21, 1
      %p60 = por %p58, %p59
      %p61 = scmp.ne.s32.totalorder %s52, %s53
      %p62 = scmp.eq.s32.totalorder %s21, 0
      %p63 = por %p61, %p62
      %p64 = scmp.ne.s32.totalorder %s52, %s53
      %p65 = scmp.eq.s32.totalorder %s22, 1
      %p66 = por %p64, %p65
      %p68 = scmp.ne.s32.totalorder %s53, %s67
      %p69 = scmp.eq.s32.totalorder %s22, 0
      %p70 = por %p68, %p69
      %s72 = sadd.s32 %s71, 1
      %p75 = scmp.eq.s32.totalorder %s16, 1
      %p76 = scmp.ne.s32.totalorder %s71, %s73
      %p77 = scmp.eq.s32.totalorder %s16, 0
      %p78 = por %p76, %p77
      %p79 = scmp.ne.s32.totalorder %s71, %s73
      %p80 = scmp.eq.s32.totalorder %s21, 1
      %p81 = por %p79, %p80
      %p82 = scmp.ne.s32.totalorder %s73, %s74
      %p83 = scmp.eq.s32.totalorder %s21, 0
      %p84 = por %p82, %p83
      %p85 = scmp.ne.s32.totalorder %s73, %s74
      %p86 = scmp.eq.s32.totalorder %s22, 1
      %p87 = por %p85, %p86
      %p89 = scmp.ne.s32.totalorder %s74, %s88
      %p90 = scmp.eq.s32.totalorder %s22, 0
      %p91 = por %p89, %p90
      %s93 = sadd.s32 %s92, 1
      %p96 = scmp.eq.s32.totalorder %s16, 1
      %p97 = scmp.ne.s32.totalorder %s92, %s94
      %p98 = scmp.eq.s32.totalorder %s16, 0
      %p99 = por %p97, %p98
      %p100 = scmp.ne.s32.totalorder %s92, %s94
      %p101 = scmp.eq.s32.totalorder %s21, 1
      %p102 = por %p100, %p101
      %p103 = scmp.ne.s32.totalorder %s94, %s95
      %p104 = scmp.eq.s32.totalorder %s21, 0
      %p105 = por %p103, %p104
      %p106 = scmp.ne.s32.totalorder %s94, %s95
      %p107 = scmp.eq.s32.totalorder %s22, 1
      %p108 = por %p106, %p107
      %p110 = scmp.ne.s32.totalorder %s95, %s109
      %p111 = scmp.eq.s32.totalorder %s22, 0
      %p112 = por %p110, %p111
      %s114 = sadd.s32 %s113, 1
      %p117 = scmp.eq.s32.totalorder %s16, 1
      %p118 = scmp.ne.s32.totalorder %s113, %s115
      %p119 = scmp.eq.s32.totalorder %s16, 0
      %p120 = por %p118, %p119
      %p121 = scmp.ne.s32.totalorder %s113, %s115
      %p122 = scmp.eq.s32.totalorder %s21, 1
      %p123 = por %p121, %p122
      %p124 = scmp.ne.s32.totalorder %s115, %s116
      %p125 = scmp.eq.s32.totalorder %s21, 0
      %p126 = por %p124, %p125
      %p127 = scmp.ne.s32.totalorder %s115, %s116
      %p128 = scmp.eq.s32.totalorder %s22, 1
      %p129 = por %p127, %p128
      %p131 = scmp.ne.s32.totalorder %s116, %s130
      %p132 = scmp.eq.s32.totalorder %s22, 0
      %p133 = por %p131, %p132
      %s134 = ssub.s32 %s16, %s23
      %p135 = scmp.eq.s32.totalorder %s134, 0
      %s137 = sadd.s32 %s136, 1
      %s138 = scalar_select %p135, %s136, %s137
      %p141 = pneg %p135
      %p142 = scmp.eq.s32.totalorder %s16, 1
      %p143 = por %p141, %p142
      %p144 = scmp.ne.s32.totalorder %s136, %s139
      %p145 = scmp.eq.s32.totalorder %s16, 0
      %p146 = por %p144, %p145
      %p147 = scmp.ne.s32.totalorder %s136, %s139
      %p148 = scmp.eq.s32.totalorder %s21, 1
      %p149 = por %p147, %p148
      %p150 = scmp.ne.s32.totalorder %s139, %s140
      %p151 = scmp.eq.s32.totalorder %s21, 0
      %p152 = por %p150, %p151
      %p153 = scmp.ne.s32.totalorder %s139, %s140
      %p154 = scmp.eq.s32.totalorder %s22, 1
      %p155 = por %p153, %p154
      %p157 = scmp.ne.s32.totalorder %s140, %s156
      %p158 = scmp.eq.s32.totalorder %s22, 0
      %p159 = por %p157, %p158
      %p160 = scmp.le.s32.totalorder 1, %s16
      %p161 = scmp.lt.s32.totalorder %s16, 3
      %p162 = pnand %p160, %p161
      %p163 = pneg %p162
      // Predicated region
      $region9: #{tpu_custom_call.1} parent=5 // pred_check
        _
      $region10: #{tpu_custom_call.1} parent=5 // pred_check_branch
        %165 = sbr.rel (%p162) target = $region12
      $region11: #{tpu_custom_call.1} parent=5 // pred_region
        %s166 = ssub.s32 %s16, 1
        // Predicated region
        $region13: #{tpu_custom_call.1} parent=11 // pred_check
          %p167 = pneg %p63
        $region14: #{tpu_custom_call.1} parent=11 // pred_check_branch
          %169 = sbr.rel (%p167) target = $region16
        $region15: #{tpu_custom_call.1} parent=11 // pred_region
          _
        $region16: #{tpu_custom_call.1} parent=11 // pred_fallthru
          _
        // Predicated region
        $region17: #{tpu_custom_call.1} parent=11 // pred_check
          %p170 = pneg %p84
        $region18: #{tpu_custom_call.1} parent=11 // pred_check_branch
          %172 = sbr.rel (%p170) target = $region20
        $region19: #{tpu_custom_call.1} parent=11 // pred_region
          _
        $region20: #{tpu_custom_call.1} parent=11 // pred_fallthru
          _
        // Predicated region
        $region21: #{tpu_custom_call.1} parent=11 // pred_check
          %p173 = pneg %p105
        $region22: #{tpu_custom_call.1} parent=11 // pred_check_branch
          %175 = sbr.rel (%p173) target = $region24
        $region23: #{tpu_custom_call.1} parent=11 // pred_region
          _
        $region24: #{tpu_custom_call.1} parent=11 // pred_fallthru
          _
        // Predicated region
        $region25: #{tpu_custom_call.1} parent=11 // pred_check
          %p176 = pneg %p126
        $region26: #{tpu_custom_call.1} parent=11 // pred_check_branch
          %178 = sbr.rel (%p176) target = $region28
        $region27: #{tpu_custom_call.1} parent=11 // pred_region
          _
        $region28: #{tpu_custom_call.1} parent=11 // pred_fallthru
          _
      $region12: #{tpu_custom_call.1} parent=5 // pred_fallthru
        _
      %p179 = scmp.lt.s32.totalorder %s16, 2
      // Predicated region
      $region29: #{tpu_custom_call.1} parent=5 // pred_check
        %p180 = pneg %p179
      $region30: #{tpu_custom_call.1} parent=5 // pred_check_branch
        %182 = sbr.rel (%p180) target = $region32
      $region31: #{tpu_custom_call.1} parent=5 // pred_region
        // Predicated region
        $region33: #{tpu_custom_call.1} parent=31 // pred_check
          %p183 = pneg %p36
        $region34: #{tpu_custom_call.1} parent=31 // pred_check_branch
          %185 = sbr.rel (%p183) target = $region36
        $region35: #{tpu_custom_call.1} parent=31 // pred_region
          %s186 = sand.u32 %s26, 1
          %s187 = scalar_lea.sflag [#allocation4], %s186
          %s188 = sand.u32 %s26, 1
          %s189 = smul.addr %s188, 64
          %s190 = scalar_lea.vmem [#allocation3], %s189
          %s191 = smul.u32 16, %s16
          %s193 = ssub.s32 1024, 1024
          %194 = vsyncadd %s187, %s193
          %s195 = smul.addr %s191, 64
          %s196 = scalar_lea.hbm %s0, %s195
          %s197 = sshll.u32 %s190, 4
          %s198 = int_to_ptr.vmem [resolvable:$true] %s197
          %203 = dma.hbm_to_vmem [thread:$0]  %s196, 1024, %s198, %s187, 64, 64, 4
        $region36: #{tpu_custom_call.1} parent=31 // pred_fallthru
          _
      $region32: #{tpu_custom_call.1} parent=5 // pred_fallthru
        _
      %p204 = scmp.le.s32.totalorder 1, %s16
      %p205 = scmp.lt.s32.totalorder %s16, 3
      %p206 = pnand %p204, %p205
      %p207 = pneg %p206
      // Predicated region
      $region37: #{tpu_custom_call.1} parent=5 // pred_check
        _
      $region38: #{tpu_custom_call.1} parent=5 // pred_check_branch
        %209 = sbr.rel (%p206) target = $region40
      $region39: #{tpu_custom_call.1} parent=5 // pred_region
        %s210 = ssub.s32 %s16, 1
        %s211 = sand.u32 %s29, 1
        %s212 = scalar_lea.sflag [#allocation4], %s211
        %s213 = sand.u32 %s29, 1
        %s214 = smul.addr %s213, 64
        %s215 = scalar_lea.vmem [#allocation3], %s214
        // Predicated region
        $region41: #{tpu_custom_call.1} parent=39 // pred_check
          %p216 = pneg %p42
        $region42: #{tpu_custom_call.1} parent=39 // pred_check_branch
          %218 = sbr.rel (%p216) target = $region44
        $region43: #{tpu_custom_call.1} parent=39 // pred_region
          %219 = dma.done %s212, 1024
        $region44: #{tpu_custom_call.1} parent=39 // pred_fallthru
          _
        %s220 = sand.u32 %s29, 1
        %s221 = scalar_lea.sflag [#allocation4], %s220
        %s222 = sand.u32 %s29, 1
        %s223 = smul.addr %s222, 64
        %s224 = scalar_lea.vmem [#allocation3], %s223
        %p225 = pneg %p42
        %p226 = pneg %p39
        %p227 = pneg %p63
        %p228 = pneg %p60
        %p229 = pneg %p84
        %p230 = pneg %p81
        %p231 = pneg %p105
        %p232 = pneg %p102
        %p233 = pneg %p126
        %p234 = pneg %p123
        %p235 = pneg %p152
        %p236 = pneg %p149
        %s237 = smul.u32 16, %s21
        %p238 = scmp.lt.s32.totalorder %s237, 31
        %s239 = scalar_select %p238, %s237, 31
        %s240 = smul.addr %s239, 8
        %s241 = scalar_lea.vmem %s5, %s240
        %s242 = smul.u32 16, %s21
        %s243 = smul.u32 16, %s21
        %p244 = scmp.lt.s32.totalorder %s243, 31
        %s245 = scalar_select %p244, %s243, 31
        %s246 = smul.addr %s245, 8
        %s247 = scalar_lea.vmem %s5, %s246
        %s248 = smul.u32 16, %s21
        %v250 = vld [vmem:[%s215] sm:$0xf]
        %v251 = vld [vmem:[%s215 + $0x4] sm:$0xf]
        %v252 = vld [vmem:[%s215 + $0x8] sm:$0xf]
        %v253 = vld [vmem:[%s215 + $0xc] sm:$0xf]
        %v254 = vld [vmem:[%s215 + $0x10] sm:$0xf]
        %v255 = vld [vmem:[%s215 + $0x14] sm:$0xf]
        %v256 = vld [vmem:[%s215 + $0x18] sm:$0xf]
        %v257 = vld [vmem:[%s215 + $0x1c] sm:$0xf]
        %v258 = vld [vmem:[%s215 + $0x20] sm:$0xf]
        %v259 = vld [vmem:[%s215 + $0x24] sm:$0xf]
        %v260 = vld [vmem:[%s215 + $0x28] sm:$0xf]
        %v261 = vld [vmem:[%s215 + $0x2c] sm:$0xf]
        %v262 = vld [vmem:[%s215 + $0x30] sm:$0xf]
        %v263 = vld [vmem:[%s215 + $0x34] sm:$0xf]
        %v264 = vld [vmem:[%s215 + $0x38] sm:$0xf]
        %v265 = vld [vmem:[%s215 + $0x3c] sm:$0xf]
        %v266 = vld [vmem:[%s1] sm:$0xf]
        %v267 = vld [vmem:[%s1 + $0x4] sm:$0xf]
        %v268 = vld [vmem:[%s1 + $0x8] sm:$0xf]
        %v269 = vld [vmem:[%s1 + $0xc] sm:$0xf]
        %v270 = vld [vmem:[%s1 + $0x10] sm:$0xf]
        %v271 = vld [vmem:[%s1 + $0x14] sm:$0xf]
        %v272 = vld [vmem:[%s1 + $0x18] sm:$0xf]
        %v273 = vld [vmem:[%s1 + $0x1c] sm:$0xf]
        %v274 = vld [vmem:[%s1 + $0x20] sm:$0xf]
        %v275 = vld [vmem:[%s1 + $0x24] sm:$0xf]
        %v276 = vld [vmem:[%s1 + $0x28] sm:$0xf]
        %v277 = vld [vmem:[%s1 + $0x2c] sm:$0xf]
        %v278 = vld [vmem:[%s1 + $0x30] sm:$0xf]
        %v279 = vld [vmem:[%s1 + $0x34] sm:$0xf]
        %v280 = vld [vmem:[%s1 + $0x38] sm:$0xf]
        %v281 = vld [vmem:[%s1 + $0x3c] sm:$0xf]
        %v282 = vld [vmem:[%s2] sm:$0x1]
        %v284 = vlaneseq
        %v285 = vshrl.u32 %v284, 7
        %v286 = vsub.s32 0, %v285
        %v287 = vrot.slane %v282, %v286
        %v305 = vunpack.c.l.b16 %v250
        %v306 = vunpack.c.l.b16 %v251
        %v307 = vunpack.c.l.b16 %v252
        %v308 = vunpack.c.l.b16 %v253
        %v309 = vunpack.c.l.b16 %v254
        %v310 = vunpack.c.l.b16 %v255
        %v311 = vunpack.c.l.b16 %v256
        %v312 = vunpack.c.l.b16 %v257
        %v313 = vunpack.c.l.b16 %v258
        %v314 = vunpack.c.l.b16 %v259
        %v315 = vunpack.c.l.b16 %v260
        %v316 = vunpack.c.l.b16 %v261
        %v317 = vunpack.c.l.b16 %v262
        %v318 = vunpack.c.l.b16 %v263
        %v319 = vunpack.c.l.b16 %v264
        %v320 = vunpack.c.l.b16 %v265
        %v321 = vpack.c.b16 %v306, %v305
        %v322 = vpack.c.b16 %v308, %v307
        %v323 = vpack.c.b16 %v310, %v309
        %v324 = vpack.c.b16 %v312, %v311
        %v325 = vpack.c.b16 %v314, %v313
        %v326 = vpack.c.b16 %v316, %v315
        %v327 = vpack.c.b16 %v318, %v317
        %v328 = vpack.c.b16 %v320, %v319
        %v353 = vunpack.c.l.b16 %v266
        %v354 = vunpack.c.l.b16 %v267
        %v355 = vunpack.c.l.b16 %v268
        %v356 = vunpack.c.l.b16 %v269
        %v357 = vunpack.c.l.b16 %v270
        %v358 = vunpack.c.l.b16 %v271
        %v359 = vunpack.c.l.b16 %v272
        %v360 = vunpack.c.l.b16 %v273
        %v361 = vunpack.c.l.b16 %v274
        %v362 = vunpack.c.l.b16 %v275
        %v363 = vunpack.c.l.b16 %v276
        %v364 = vunpack.c.l.b16 %v277
        %v365 = vunpack.c.l.b16 %v278
        %v366 = vunpack.c.l.b16 %v279
        %v367 = vunpack.c.l.b16 %v280
        %v368 = vunpack.c.l.b16 %v281
        %v369 = vpack.c.b16 %v354, %v353
        %v370 = vpack.c.b16 %v356, %v355
        %v371 = vpack.c.b16 %v358, %v357
        %v372 = vpack.c.b16 %v360, %v359
        %v373 = vpack.c.b16 %v362, %v361
        %v374 = vpack.c.b16 %v364, %v363
        %v375 = vpack.c.b16 %v366, %v365
        %v376 = vpack.c.b16 %v368, %v367
        %385 = vmatprep.subr.bf16.mxu0 0
        %386 = vmatpush1.bf16.msra.mxu0 %v369
        %387 = vmatprep.subr.bf16.mxu0 0
        %388 = vmatpush1.bf16.msra.mxu0 %v370
        %389 = vmatprep.subr.bf16.mxu0 0
        %390 = vmatpush1.bf16.msra.mxu0 %v371
        %391 = vmatprep.subr.bf16.mxu0 0
        %392 = vmatpush1.bf16.msra.mxu0 %v372
        %393 = vmatprep.subr.bf16.mxu0 0
        %394 = vmatpush1.bf16.msra.mxu0 %v373
        %395 = vmatprep.subr.bf16.mxu0 0
        %396 = vmatpush1.bf16.msra.mxu0 %v374
        %397 = vmatprep.subr.bf16.mxu0 0
        %398 = vmatpush1.bf16.msra.mxu0 %v375
        %399 = vmatprep.subr.bf16.mxu0 0
        %400 = vmatpush1.bf16.msra.mxu0 %v376
        %401 = vmatprep.subr.bf16.mxu0 0
        %402 = vmatpush1.bf16.msra.mxu0 0
        %403 = vmatprep.subr.bf16.mxu0 0
        %404 = vmatpush1.bf16.msra.mxu0 0
        %405 = vmatprep.subr.bf16.mxu0 0
        %406 = vmatpush1.bf16.msra.mxu0 0
        %407 = vmatprep.subr.bf16.mxu0 0
        %408 = vmatpush1.bf16.msra.mxu0 0
        %409 = vmatprep.subr.bf16.mxu0 0
        %410 = vmatpush1.bf16.msra.mxu0 0
        %411 = vmatprep.subr.bf16.mxu0 0
        %412 = vmatpush1.bf16.msra.mxu0 0
        %413 = vmatprep.subr.bf16.mxu0 0
        %414 = vmatpush1.bf16.msra.mxu0 0
        %415 = vmatprep.subr.bf16.mxu0 0
        %416 = vmatpush1.bf16.msra.mxu0 0
        %417 = vmatprep.mubr.bf16.mxu0 0
        %418 = vmatmul.mubr.bf16.gmra.mrb[0].mxu0 %v321
        %v419 = vpop.f32.mrb[0].mxu0
        %v420 = vadd.f32 %v287, %v419
        %v421 = vpop.f32.mrb[0].mxu0
        %v422 = vpop.f32.mrb[0].mxu0
        %v423 = vadd.f32 %v287, %v422
        %v424 = vpop.f32.mrb[0].mxu0
        %425 = vmatprep.mubr.bf16.mxu0 0
        %426 = vmatmul.mubr.bf16.gmra.mrb[0].mxu0 %v322
        %v427 = vpop.f32.mrb[0].mxu0
        %v428 = vadd.f32 %v287, %v427
        %v429 = vpop.f32.mrb[0].mxu0
        %v430 = vpop.f32.mrb[0].mxu0
        %v431 = vadd.f32 %v287, %v430
        %v432 = vpop.f32.mrb[0].mxu0
        %433 = vmatprep.mubr.bf16.mxu0 0
        %434 = vmatmul.mubr.bf16.gmra.mrb[0].mxu0 %v323
        %v435 = vpop.f32.mrb[0].mxu0
        %v436 = vadd.f32 %v287, %v435
        %v437 = vpop.f32.mrb[0].mxu0
        %v438 = vpop.f32.mrb[0].mxu0
        %v439 = vadd.f32 %v287, %v438
        %v440 = vpop.f32.mrb[0].mxu0
        %441 = vmatprep.mubr.bf16.mxu0 0
        %442 = vmatmul.mubr.bf16.gmra.mrb[0].mxu0 %v324
        %v443 = vpop.f32.mrb[0].mxu0
        %v444 = vadd.f32 %v287, %v443
        %v445 = vpop.f32.mrb[0].mxu0
        %v446 = vpop.f32.mrb[0].mxu0
        %v447 = vadd.f32 %v287, %v446
        %v448 = vpop.f32.mrb[0].mxu0
        %449 = vmatprep.mubr.bf16.mxu0 0
        %450 = vmatmul.mubr.bf16.gmra.mrb[0].mxu0 %v325
        %v451 = vpop.f32.mrb[0].mxu0
        %v452 = vadd.f32 %v287, %v451
        %v453 = vpop.f32.mrb[0].mxu0
        %v454 = vpop.f32.mrb[0].mxu0
        %v455 = vadd.f32 %v287, %v454
        %v456 = vpop.f32.mrb[0].mxu0
        %457 = vmatprep.mubr.bf16.mxu0 0
        %458 = vmatmul.mubr.bf16.gmra.mrb[0].mxu0 %v326
        %v459 = vpop.f32.mrb[0].mxu0
        %v460 = vadd.f32 %v287, %v459
        %v461 = vpop.f32.mrb[0].mxu0
        %v462 = vpop.f32.mrb[0].mxu0
        %v463 = vadd.f32 %v287, %v462
        %v464 = vpop.f32.mrb[0].mxu0
        %465 = vmatprep.mubr.bf16.mxu0 0
        %466 = vmatmul.mubr.bf16.gmra.mrb[0].mxu0 %v327
        %v467 = vpop.f32.mrb[0].mxu0
        %v468 = vadd.f32 %v287, %v467
        %v469 = vpop.f32.mrb[0].mxu0
        %v470 = vpop.f32.mrb[0].mxu0
        %v471 = vadd.f32 %v287, %v470
        %v472 = vpop.f32.mrb[0].mxu0
        %473 = vmatprep.mubr.bf16.mxu0 0
        %474 = vmatmul.mubr.bf16.gmra.mrb[0].mxu0 %v328
        %v475 = vpop.f32.mrb[0].mxu0
        %v476 = vadd.f32 %v287, %v475
        %v477 = vpop.f32.mrb[0].mxu0
        %v478 = vpop.f32.mrb[0].mxu0
        %v479 = vadd.f32 %v287, %v478
        %v480 = vpop.f32.mrb[0].mxu0
        %481 = vdwg.mxu0
        %v482 = vtanh.pop %v420
        %v483 = vtanh.pop %v423
        %v484 = vtanh.pop %v428
        %v485 = vtanh.pop %v431
        %v486 = vtanh.pop %v436
        %v487 = vtanh.pop %v439
        %v488 = vtanh.pop %v444
        %v489 = vtanh.pop %v447
        %v490 = vtanh.pop %v452
        %v491 = vtanh.pop %v455
        %v492 = vtanh.pop %v460
        %v493 = vtanh.pop %v463
        %v494 = vtanh.pop %v468
        %v495 = vtanh.pop %v471
        %v496 = vtanh.pop %v476
        %v497 = vtanh.pop %v479
        %v498 = vld [vmem:[%s3] sm:$0x1]
        %v500 = vlaneseq
        %v501 = vshrl.u32 %v500, 7
        %v502 = vsub.s32 0, %v501
        %v503 = vrot.slane %v498, %v502
        %v505 = vmul.f32 %v482, %v503
        %v506 = vmul.f32 %v483, %v503
        %v507 = vmul.f32 %v484, %v503
        %v508 = vmul.f32 %v485, %v503
        %v509 = vmul.f32 %v486, %v503
        %v510 = vmul.f32 %v487, %v503
        %v511 = vmul.f32 %v488, %v503
        %v512 = vmul.f32 %v489, %v503
        %v513 = vmul.f32 %v490, %v503
        %v514 = vmul.f32 %v491, %v503
        %v515 = vmul.f32 %v492, %v503
        %v516 = vmul.f32 %v493, %v503
        %v517 = vmul.f32 %v494, %v503
        %v518 = vmul.f32 %v495, %v503
        %v519 = vmul.f32 %v496, %v503
        %v520 = vmul.f32 %v497, %v503
        %vm521 = vcmask 523264
        %v522 = vsel %vm521, %v505, 0.0
        %523 = vadd.xlane.f32.xlu0 %v522
        %v524 = vpop.xlane.xlu0 %523
        %v525 = vsel %vm521, %v506, 0.0
        %526 = vadd.xlane.f32.xlu0 %v525
        %v527 = vpop.xlane.xlu0 %526
        %v528 = vsel %vm521, %v507, 0.0
        %529 = vadd.xlane.f32.xlu0 %v528
        %v530 = vpop.xlane.xlu0 %529
        %v531 = vsel %vm521, %v508, 0.0
        %532 = vadd.xlane.f32.xlu0 %v531
        %v533 = vpop.xlane.xlu0 %532
        %v534 = vsel %vm521, %v509, 0.0
        %535 = vadd.xlane.f32.xlu0 %v534
        %v536 = vpop.xlane.xlu0 %535
        %v537 = vsel %vm521, %v510, 0.0
        %538 = vadd.xlane.f32.xlu0 %v537
        %v539 = vpop.xlane.xlu0 %538
        %v540 = vsel %vm521, %v511, 0.0
        %541 = vadd.xlane.f32.xlu0 %v540
        %v542 = vpop.xlane.xlu0 %541
        %v543 = vsel %vm521, %v512, 0.0
        %544 = vadd.xlane.f32.xlu0 %v543
        %v545 = vpop.xlane.xlu0 %544
        %v546 = vsel %vm521, %v513, 0.0
        %547 = vadd.xlane.f32.xlu0 %v546
        %v548 = vpop.xlane.xlu0 %547
        %v549 = vsel %vm521, %v514, 0.0
        %550 = vadd.xlane.f32.xlu0 %v549
        %v551 = vpop.xlane.xlu0 %550
        %v552 = vsel %vm521, %v515, 0.0
        %553 = vadd.xlane.f32.xlu0 %v552
        %v554 = vpop.xlane.xlu0 %553
        %v555 = vsel %vm521, %v516, 0.0
        %556 = vadd.xlane.f32.xlu0 %v555
        %v557 = vpop.xlane.xlu0 %556
        %v558 = vsel %vm521, %v517, 0.0
        %559 = vadd.xlane.f32.xlu0 %v558
        %v560 = vpop.xlane.xlu0 %559
        %v561 = vsel %vm521, %v518, 0.0
        %562 = vadd.xlane.f32.xlu0 %v561
        %v563 = vpop.xlane.xlu0 %562
        %v564 = vsel %vm521, %v519, 0.0
        %565 = vadd.xlane.f32.xlu0 %v564
        %v566 = vpop.xlane.xlu0 %565
        %v567 = vsel %vm521, %v520, 0.0
        %568 = vadd.xlane.f32.xlu0 %v567
        %v569 = vpop.xlane.xlu0 %568
        %v570 = vld [vmem:[#allocation2] sm:$0x1]
        %v572 = vlaneseq
        %v573 = vshrl.u32 %v572, 7
        %v574 = vsub.s32 0, %v573
        %v575 = vrot.slane %v570, %v574
        %v577 = vadd.f32 %v524, %v575
        %v578 = vadd.f32 %v527, %v575
        %v579 = vadd.f32 %v530, %v575
        %v580 = vadd.f32 %v533, %v575
        %v581 = vadd.f32 %v536, %v575
        %v582 = vadd.f32 %v539, %v575
        %v583 = vadd.f32 %v542, %v575
        %v584 = vadd.f32 %v545, %v575
        %v585 = vadd.f32 %v548, %v575
        %v586 = vadd.f32 %v551, %v575
        %v587 = vadd.f32 %v554, %v575
        %v588 = vadd.f32 %v557, %v575
        %v589 = vadd.f32 %v560, %v575
        %v590 = vadd.f32 %v563, %v575
        %v591 = vadd.f32 %v566, %v575
        %v592 = vadd.f32 %v569, %v575
        %vm593 = vcmask 7168
        %594 = vst.msk [vmem:[%s247] sm:$0xff] %vm593, %v577
        %595 = vst.msk [vmem:[%s247 + $0x8] sm:$0xff] %vm593, %v578
        %596 = vst.msk [vmem:[%s247 + $0x10] sm:$0xff] %vm593, %v579
        %597 = vst.msk [vmem:[%s247 + $0x18] sm:$0xff] %vm593, %v580
        %598 = vst.msk [vmem:[%s247 + $0x20] sm:$0xff] %vm593, %v581
        %599 = vst.msk [vmem:[%s247 + $0x28] sm:$0xff] %vm593, %v582
        %600 = vst.msk [vmem:[%s247 + $0x30] sm:$0xff] %vm593, %v583
        %601 = vst.msk [vmem:[%s247 + $0x38] sm:$0xff] %vm593, %v584
        %602 = vst.msk [vmem:[%s247 + $0x40] sm:$0xff] %vm593, %v585
        %603 = vst.msk [vmem:[%s247 + $0x48] sm:$0xff] %vm593, %v586
        %604 = vst.msk [vmem:[%s247 + $0x50] sm:$0xff] %vm593, %v587
        %605 = vst.msk [vmem:[%s247 + $0x58] sm:$0xff] %vm593, %v588
        %606 = vst.msk [vmem:[%s247 + $0x60] sm:$0xff] %vm593, %v589
        %607 = vst.msk [vmem:[%s247 + $0x68] sm:$0xff] %vm593, %v590
        %608 = vst.msk [vmem:[%s247 + $0x70] sm:$0xff] %vm593, %v591
        %609 = vst.msk [vmem:[%s247 + $0x78] sm:$0xff] %vm593, %v592
        %s610 = smul.u32 16, %s21
        %p611 = scmp.lt.s32.totalorder %s610, 31
        %s612 = scalar_select %p611, %s610, 31
        %s613 = smul.addr %s612, 8
        %s614 = scalar_lea.vmem %s5, %s613
        // Predicated region
        $region45: #{tpu_custom_call.1} parent=39 // pred_check
          %p615 = pneg %p149
        $region46: #{tpu_custom_call.1} parent=39 // pred_check_branch
          %617 = sbr.rel (%p615) target = $region48
        $region47: #{tpu_custom_call.1} parent=39 // pred_region
          %s618 = smul.u32 16, %s21
        $region48: #{tpu_custom_call.1} parent=39 // pred_fallthru
          _
      $region40: #{tpu_custom_call.1} parent=5 // pred_fallthru
        _
      %p619 = scmp.le.s32.totalorder 2, %s16
      // Predicated region
      $region49: #{tpu_custom_call.1} parent=5 // pred_check
        %p620 = pneg %p619
      $region50: #{tpu_custom_call.1} parent=5 // pred_check_branch
        %622 = sbr.rel (%p620) target = $region52
      $region51: #{tpu_custom_call.1} parent=5 // pred_region
        %s623 = ssub.s32 %s16, 2
        // Predicated region
        $region53: #{tpu_custom_call.1} parent=51 // pred_check
          %p624 = pneg %p155
        $region54: #{tpu_custom_call.1} parent=51 // pred_check_branch
          %626 = sbr.rel (%p624) target = $region56
        $region55: #{tpu_custom_call.1} parent=51 // pred_region
          %s627 = smul.u32 16, %s22
          %p628 = scmp.lt.s32.totalorder %s627, 31
          %s629 = scalar_select %p628, %s627, 31
          %s630 = smul.addr %s629, 8
          %s631 = scalar_lea.vmem %s5, %s630
        $region56: #{tpu_custom_call.1} parent=51 // pred_fallthru
          _
      $region52: #{tpu_custom_call.1} parent=5 // pred_fallthru
        _
    $region6: #{tpu_custom_call.1} parent=1 // loop_footer
      %s20 = sadd.s32 1, %s16
    $region7: #{tpu_custom_call.1} parent=1 // loop_footer_branch
      %15 = sbr.rel target = $region3
    $region8: #{tpu_custom_call.1} parent=1 // loop_exit
      _
    %632 = vsyncpa [#allocation4], 1
    %s633 = scalar_lea.sflag [#allocation4], 1
    %634 = vsyncpa %s633, 1

</llo_original>
